<compile_context>
chip_gen: v7x
topology: tpu7x:2x2x1
jax: 0.10.0
libtpu: 0.0.40
codegen_flags: <defaults>
</compile_context>

<pallas_src>
import functools

import jax
import jax.numpy as jnp
from jax import lax
from jax.experimental import pallas as pl
from jax.experimental.pallas import tpu as pltpu


def _cmnr_loss_kernel(a_ref, b_ref, binv_ref, out_ref, l_sc, t_sc,
                      *, scale: float, tm: int, tn: int,
                      n_valid: int, n_padded: int):
    """Grid = (anchor tiles, candidate tiles); candidate axis is the reduction.

    a_ref:    (tm, D)   pre-normalized, pre-scaled anchor tile (matmul-native dtype)
    b_ref:    (tn, D)   candidate tile (streamed)
    binv_ref: (1, Np)   full candidate inverse-norm row (resident, f32)
    out_ref:  (tm, 1)   per-anchor loss (written on the last candidate tile)
    l_sc:     (tm, 1)   f32 scratch: running sum of exp(score - scale)
    t_sc:     (tm, 1)   f32 scratch: target (diagonal) logit
    """
    i = pl.program_id(0)
    k = pl.program_id(1)
    nk = pl.num_programs(1)

    @pl.when(k == 0)
    def _init():
        l_sc[...] = jnp.zeros_like(l_sc)
        t_sc[...] = jnp.zeros_like(t_sc)

    # MXU matmul, both operands contracted on their last dim (no explicit b^T).
    raw = lax.dot_general(a_ref[...], b_ref[...],
                          dimension_numbers=(((1,), (1,)), ((), ())),
                          preferred_element_type=jnp.float32)       # (tm, tn)

    # Candidate L2 normalization as a per-column post-scale; slice the resident row.
    col0 = pl.multiple_of(k * tn, tn)
    scores = raw * binv_ref[:, pl.ds(col0, tn)]                     # (tm, tn)

    col_lo = k * tn
    if n_valid < n_padded:  # trace-time: only emit the mask when padding exists
        gc_pad = col_lo + lax.broadcasted_iota(jnp.int32, (tm, tn), 1)
        scores = jnp.where(gc_pad < n_valid, scores, -jnp.inf)

    # Constant-max logsumexp: scores <= scale (cosine bound), so no running max,
    # no per-tile max reduction, no rescaling of the accumulator.
    l_sc[...] += jnp.sum(jnp.exp(scores - scale), axis=-1, keepdims=True)

    # Target logit: label of global anchor row g is candidate column g (positives
    # occupy the first B rows of b). Only candidate tiles whose column range
    # overlaps this anchor tile's diagonal block can contribute.
    row_lo = i * tm
    overlaps = jnp.logical_and(col_lo < row_lo + tm, row_lo < col_lo + tn)

    @pl.when(overlaps)
    def _target():
        gr = row_lo + lax.broadcasted_iota(jnp.int32, (tm, tn), 0)
        gc = col_lo + lax.broadcasted_iota(jnp.int32, (tm, tn), 1)
        t_sc[...] += jnp.sum(jnp.where(gr == gc, scores, 0.0),
                             axis=-1, keepdims=True)

    @pl.when(k == nk - 1)
    def _finalize():
        out_ref[...] = scale + jnp.log(l_sc[...]) - t_sc[...]


def _round_up(x: int, m: int) -> int:
    return -(-x // m) * m


def _split_axis(size: int, preferred: int, align: int, min_tiles: int = 1):
    """Split an axis into >= min_tiles tiles of <= ~preferred rows each, every tile
    an `align` multiple. Returns (tile, padded_total); padded_total % tile == 0 and
    the padding waste is < one tile (no full-axis fallback)."""
    padded = _round_up(size, align)
    ntiles = max(min_tiles, -(-padded // preferred))
    tile = _round_up(-(-padded // ntiles), align)
    ntiles = -(-padded // tile)
    return tile, tile * ntiles


@functools.partial(jax.jit,
                   static_argnames=("scale", "mini_batch_size", "block_q", "block_n"))
def cached_mnr_loss(embeddings_a: jax.Array,
                    embeddings_b: jax.Array,
                    scale: float = 20.0,
                    mini_batch_size: int = 32,   # only affects CE weighting, which
                                                 # algebraically reduces to sum/B, so
                                                 # it does NOT constrain the tiling.
                    block_q: int = 768,          # anchor tile: arithmetic intensity.
                                                 # (v5e users may prefer 256-384.)
                    block_n: int = 1024) -> jax.Array:
    """Forward pass of CachedMultipleNegativesRankingLoss on precomputed embeddings.

    embeddings_a: [B, D] anchor embeddings (concat of reps[0])
    embeddings_b: [N, D] candidate embeddings (concat of reps[1:]); the positive for
                  anchor i must sit at row i (module semantics), so N >= B.
    Returns scalar loss (float32).
    """
    del mini_batch_size
    B, D = embeddings_a.shape
    N, D2 = embeddings_b.shape
    assert D == D2, "anchor / candidate embedding dims must match"
    assert N >= B, "candidates must contain one positive per anchor (positive i at row i)"

    dtype = embeddings_a.dtype
    itemsize = jnp.dtype(dtype).itemsize
    align_m = 8 if itemsize == 4 else (16 if itemsize == 2 else 32)

    # Anchor axis: big tiles (intensity), but >= 2 tiles where possible so the
    # "parallel" axis can be split across v7x's two TensorCores.
    tm, Bp = _split_axis(B, block_q, align_m, min_tiles=2)
    # Candidate axis: lane-dense, streamed reduction axis (last in the grid).
    tn, Np = _split_axis(N, block_n, 128, min_tiles=1)

    # One-time O(B*D) anchor normalization with `scale` folded in (hoisted out of
    # the candidate loop entirely); stays in the matmul-native dtype.
    a32 = embeddings_a.astype(jnp.float32)
    inv_a = lax.rsqrt(jnp.maximum(jnp.sum(a32 * a32, axis=-1, keepdims=True), 1e-24))
    a_n = (a32 * (inv_a * scale)).astype(dtype)

    # One-time O(N*D) candidate inverse norms (fused into one streaming pass by jit).
    b32 = embeddings_b.astype(jnp.float32)
    b_inv = 1.0 / jnp.maximum(jnp.sqrt(jnp.sum(b32 * b32, axis=-1)), 1e-12)

    # Pad to tile multiples: padded candidate columns are masked to -inf in-kernel;
    # padded anchor rows are dropped before the final mean.
    if Bp != B:
        a_n = jnp.pad(a_n, ((0, Bp - B), (0, 0)))
    b_pad = embeddings_b if Np == N else jnp.pad(embeddings_b, ((0, Np - N), (0, 0)))
    b_inv = jnp.pad(b_inv, (0, Np - N), constant_values=1.0).reshape(1, Np)

    kernel = functools.partial(_cmnr_loss_kernel, scale=float(scale),
                               tm=tm, tn=tn, n_valid=N, n_padded=Np)

    per_row = pl.pallas_call(
        kernel,
        out_shape=jax.ShapeDtypeStruct((Bp, 1), jnp.float32),
        grid_spec=pltpu.PrefetchScalarGridSpec(
            num_scalar_prefetch=0,
            grid=(Bp // tm, Np // tn),                      # reduction axis last
            in_specs=[
                pl.BlockSpec((tm, D), lambda i, k: (i, 0)),   # anchors: resident per i
                pl.BlockSpec((tn, D), lambda i, k: (k, 0)),   # candidates: streamed
                pl.BlockSpec((1, Np), lambda i, k: (0, 0)),   # inv-norms: fully resident
            ],
            out_specs=pl.BlockSpec((tm, 1), lambda i, k: (i, 0)),
            scratch_shapes=[
                pltpu.VMEM((tm, 1), jnp.float32),   # running sum of exp(score - scale)
                pltpu.VMEM((tm, 1), jnp.float32),   # target (diagonal) logit
            ],
        ),
        compiler_params=pltpu.CompilerParams(
            dimension_semantics=("parallel", "arbitrary"),
            # Safe on v7x's 64 MiB physical VMEM, above v5e/v6e scoped defaults.
            vmem_limit_bytes=48 * 1024 * 1024,
        ),
    )(a_n, b_pad, b_inv)

    # sum_mb( CE_mb * len(mb) / B ) == sum(per_row) / B  (padded rows excluded).
    return jnp.sum(per_row[:B, 0]) / B


def _reference_loss(a, b, scale):
    a = a.astype(jnp.float32)
    b = b.astype(jnp.float32)
    a_n = a / jnp.maximum(jnp.linalg.norm(a, axis=-1, keepdims=True), 1e-12)
    b_n = b / jnp.maximum(jnp.linalg.norm(b, axis=-1, keepdims=True), 1e-12)
    scores = a_n @ b_n.T * scale
    lse = jax.scipy.special.logsumexp(scores, axis=-1)
    tgt = scores[jnp.arange(a.shape[0]), jnp.arange(a.shape[0])]
    return jnp.mean(lse - tgt)


if __name__ == "__main__":
    key = jax.random.PRNGKey(0)
    B, D = 16, 64
    num_cols = 16            # 1 positive column + 15 hard-negative columns (reps[1:])
    N = B * num_cols         # 256 candidates
    scale = 20.0

    ka, kb = jax.random.split(key)
    a = jax.random.normal(ka, (B, D), dtype=jnp.float32)
    b = jax.random.normal(kb, (N, D), dtype=jnp.float32)
    # positives: row i of b is a (noisy) match for anchor i
    b = b.at[:B].set(0.3 * a + b[:B])

    # f32 path with small candidate blocks to exercise the 2-D (anchor x candidate)
    # grid, the constant-max online accumulation and the diagonal-tile logic.
    loss = cached_mnr_loss(a, b, scale=scale, block_n=128)
    loss = jax.block_until_ready(loss)
    ref = _reference_loss(a, b, scale)
    assert jnp.allclose(loss, ref, atol=5e-2, rtol=5e-2), (loss, ref)

    # bf16 path (MXU-native operands), default large blocks.
    a16, b16 = a.astype(jnp.bfloat16), b.astype(jnp.bfloat16)
    loss16 = cached_mnr_loss(a16, b16, scale=scale)
    loss16 = jax.block_until_ready(loss16)
    ref16 = _reference_loss(a16, b16, scale)
    assert jnp.allclose(loss16, ref16, atol=2e-1, rtol=1e-1), (loss16, ref16)

    # Ragged shapes: B=12 (anchor-row padding), N=250 (candidate padding + mask).
    Br, Nr = 12, 250
    ar = jax.random.normal(jax.random.PRNGKey(1), (Br, D), dtype=jnp.float32)
    br = jax.random.normal(jax.random.PRNGKey(2), (Nr, D), dtype=jnp.float32)
    br = br.at[:Br].set(0.3 * ar + br[:Br])
    loss_r = cached_mnr_loss(ar, br, scale=scale, block_n=128)
    loss_r = jax.block_until_ready(loss_r)
    ref_r = _reference_loss(ar, br, scale)
    assert jnp.allclose(loss_r, ref_r, atol=5e-2, rtol=5e-2), (loss_r, ref_r)

    print("KERNEL_OK")
</pallas_src>

<mosaic_0001>
module attributes {stable_mosaic.version = 11 : i64} {
  func.func @_cmnr_loss_kernel(%arg0: i32, %arg1: i32, %arg2: memref<8x64xf32, #tpu.memory_space<vmem>>, %arg3: memref<128x64xf32, #tpu.memory_space<vmem>>, %arg4: memref<1x256xf32, #tpu.memory_space<vmem>>, %arg5: memref<8x1xf32, #tpu.memory_space<vmem>>, %arg6: memref<8x1xf32, #tpu.memory_space<vmem>>, %arg7: memref<8x1xf32, #tpu.memory_space<vmem>>) attributes {dimension_semantics = [#tpu.dimension_semantics<parallel>, #tpu.dimension_semantics<arbitrary>], iteration_bounds = array<i64: 2, 2>, scalar_prefetch = 0 : i64, scratch_operands = 2 : i64, tpu.core_type = #tpu.core_type<tc>, window_params = [{transform_indices = @transform_0, window_bounds = array<i64: 8, 64>}, {transform_indices = @transform_1, window_bounds = array<i64: 128, 64>}, {pipeline_mode = #tpu.pipeline_mode<synchronous>, transform_indices = @transform_2, window_bounds = array<i64: 1, 256>}, {transform_indices = @transform_3, window_bounds = array<i64: 8, 1>}]} {
    %c0_i32 = arith.constant 0 : i32
    %0 = arith.cmpi eq, %arg1, %c0_i32 : i32
    %1 = arith.extui %0 : i1 to i32
    %c0_i32_0 = arith.constant 0 : i32
    %2 = arith.cmpi ne, %1, %c0_i32_0 : i32
    scf.if %2 {
      %cst_16 = arith.constant 0.000000e+00 : f32
      %32 = vector.broadcast %cst_16 : f32 to vector<8x1xf32>
      %c0_17 = arith.constant 0 : index
      %c0_18 = arith.constant 0 : index
      %33 = vector.load %arg6[%c0_17, %c0_18] : memref<8x1xf32, #tpu.memory_space<vmem>>, vector<8x1xf32>
      tpu.vector_store %arg6[%c0_17, %c0_18], %32 {strides = array<i32>} : memref<8x1xf32, #tpu.memory_space<vmem>>, vector<8x1xf32>,
      %cst_19 = arith.constant 0.000000e+00 : f32
      %34 = vector.broadcast %cst_19 : f32 to vector<8x1xf32>
      %c0_20 = arith.constant 0 : index
      %c0_21 = arith.constant 0 : index
      %35 = vector.load %arg7[%c0_20, %c0_21] : memref<8x1xf32, #tpu.memory_space<vmem>>, vector<8x1xf32>
      tpu.vector_store %arg7[%c0_20, %c0_21], %34 {strides = array<i32>} : memref<8x1xf32, #tpu.memory_space<vmem>>, vector<8x1xf32>,
    } else {
    }
    %c0 = arith.constant 0 : index
    %c0_1 = arith.constant 0 : index
    %3 = vector.load %arg2[%c0, %c0_1] : memref<8x64xf32, #tpu.memory_space<vmem>>, vector<8x64xf32>
    %c0_2 = arith.constant 0 : index
    %c0_3 = arith.constant 0 : index
    %4 = vector.load %arg3[%c0_2, %c0_3] : memref<128x64xf32, #tpu.memory_space<vmem>>, vector<128x64xf32>
    %cst = arith.constant dense<0.000000e+00> : vector<8x128xf32>
    %5 = tpu.matmul %3, %4, %cst {dimension_numbers = #tpu.dot_dimension_numbers<[1], [1], [0], [0], [0, 0, 1, 0], [], []>} : vector<8x64xf32>, vector<128x64xf32>, vector<8x128xf32> -> vector<8x128xf32>
    %c128_i32 = arith.constant 128 : i32
    %6 = arith.muli %arg1, %c128_i32 : i32
    %7 = tpu.assume_multiple %6, 128 : i32
    %c0_4 = arith.constant 0 : index
    %8 = arith.index_cast %7 : i32 to index
    %9 = vector.load %arg4[%c0_4, %8] : memref<1x256xf32, #tpu.memory_space<vmem>>, vector<1x128xf32>
    %10 = vector.broadcast %9 : vector<1x128xf32> to vector<8x128xf32>
    %11 = arith.mulf %5, %10 : vector<8x128xf32>
    %c128_i32_5 = arith.constant 128 : i32
    %12 = arith.muli %arg1, %c128_i32_5 : i32
    %c0_6 = arith.constant 0 : index
    %c0_7 = arith.constant 0 : index
    %13 = vector.load %arg6[%c0_6, %c0_7] : memref<8x1xf32, #tpu.memory_space<vmem>>, vector<8x1xf32>
    %cst_8 = arith.constant 2.000000e+01 : f32
    %14 = vector.broadcast %cst_8 : f32 to vector<8x128xf32>
    %15 = arith.subf %11, %14 : vector<8x128xf32>
    %16 = math.exp %15 : vector<8x128xf32>
    %cst_9 = arith.constant dense<0.000000e+00> : vector<8xf32>
    %17 = vector.multi_reduction <add>, %16, %cst_9 [1] : vector<8x128xf32> to vector<8xf32>
    %18 = vector.shape_cast %17 : vector<8xf32> to vector<8x1xf32>
    %19 = arith.addf %13, %18 : vector<8x1xf32>
    %c0_10 = arith.constant 0 : index
    %c0_11 = arith.constant 0 : index
    %20 = vector.load %arg6[%c0_10, %c0_11] : memref<8x1xf32, #tpu.memory_space<vmem>>, vector<8x1xf32>
    tpu.vector_store %arg6[%c0_10, %c0_11], %19 {strides = array<i32>} : memref<8x1xf32, #tpu.memory_space<vmem>>, vector<8x1xf32>,
    %c8_i32 = arith.constant 8 : i32
    %21 = arith.muli %arg0, %c8_i32 : i32
    %c8_i32_12 = arith.constant 8 : i32
    %22 = arith.addi %21, %c8_i32_12 : i32
    %23 = arith.cmpi slt, %12, %22 : i32
    %c128_i32_13 = arith.constant 128 : i32
    %24 = arith.addi %12, %c128_i32_13 : i32
    %25 = arith.cmpi slt, %21, %24 : i32
    %26 = arith.andi %23, %25 : i1
    %27 = arith.extui %26 : i1 to i32
    %c0_i32_14 = arith.constant 0 : i32
    %28 = arith.cmpi ne, %27, %c0_i32_14 : i32
    scf.if %28 {
      %32 = tpu.iota {dimensions = array<i32: 0>} : vector<8x128xi32>
      %33 = vector.broadcast %21 : i32 to vector<8x128xi32>
      %34 = arith.addi %33, %32 : vector<8x128xi32>
      %35 = tpu.iota {dimensions = array<i32: 1>} : vector<8x128xi32>
      %36 = vector.broadcast %12 : i32 to vector<8x128xi32>
      %37 = arith.addi %36, %35 : vector<8x128xi32>
      %c0_16 = arith.constant 0 : index
      %c0_17 = arith.constant 0 : index
      %38 = vector.load %arg7[%c0_16, %c0_17] : memref<8x1xf32, #tpu.memory_space<vmem>>, vector<8x1xf32>
      %39 = arith.cmpi eq, %34, %37 : vector<8x128xi32>
      %cst_18 = arith.constant 0.000000e+00 : f32
      %40 = vector.broadcast %cst_18 : f32 to vector<8x128xf32>
      %41 = arith.select %39, %11, %40 : vector<8x128xi1>, vector<8x128xf32>
      %cst_19 = arith.constant dense<0.000000e+00> : vector<8xf32>
      %42 = vector.multi_reduction <add>, %41, %cst_19 [1] : vector<8x128xf32> to vector<8xf32>
      %43 = vector.shape_cast %42 : vector<8xf32> to vector<8x1xf32>
      %44 = arith.addf %38, %43 : vector<8x1xf32>
      %c0_20 = arith.constant 0 : index
      %c0_21 = arith.constant 0 : index
      %45 = vector.load %arg7[%c0_20, %c0_21] : memref<8x1xf32, #tpu.memory_space<vmem>>, vector<8x1xf32>
      tpu.vector_store %arg7[%c0_20, %c0_21], %44 {strides = array<i32>} : memref<8x1xf32, #tpu.memory_space<vmem>>, vector<8x1xf32>,
    } else {
    }
    %c1_i32 = arith.constant 1 : i32
    %29 = arith.cmpi eq, %arg1, %c1_i32 : i32
    %30 = arith.extui %29 : i1 to i32
    %c0_i32_15 = arith.constant 0 : i32
    %31 = arith.cmpi ne, %30, %c0_i32_15 : i32
    scf.if %31 {
      %c0_16 = arith.constant 0 : index
      %c0_17 = arith.constant 0 : index
      %32 = vector.load %arg6[%c0_16, %c0_17] : memref<8x1xf32, #tpu.memory_space<vmem>>, vector<8x1xf32>
      %33 = math.log %32 : vector<8x1xf32>
      %cst_18 = arith.constant 2.000000e+01 : f32
      %34 = vector.broadcast %cst_18 : f32 to vector<8x1xf32>
      %35 = arith.addf %34, %33 : vector<8x1xf32>
      %c0_19 = arith.constant 0 : index
      %c0_20 = arith.constant 0 : index
      %36 = vector.load %arg7[%c0_19, %c0_20] : memref<8x1xf32, #tpu.memory_space<vmem>>, vector<8x1xf32>
      %37 = arith.subf %35, %36 : vector<8x1xf32>
      %c0_21 = arith.constant 0 : index
      %c0_22 = arith.constant 0 : index
      %38 = vector.load %arg5[%c0_21, %c0_22] : memref<8x1xf32, #tpu.memory_space<vmem>>, vector<8x1xf32>
      tpu.vector_store %arg5[%c0_21, %c0_22], %37 {strides = array<i32>} : memref<8x1xf32, #tpu.memory_space<vmem>>, vector<8x1xf32>,
    } else {
    }
    return
  }
  func.func @transform_0(%arg0: i32, %arg1: i32) -> (i32, i32) {
    %c0_i32 = arith.constant 0 : i32
    %c0_i32_0 = arith.constant 0 : i32
    return %arg0, %c0_i32 : i32, i32
  }
  func.func @transform_1(%arg0: i32, %arg1: i32) -> (i32, i32) {
    %c0_i32 = arith.constant 0 : i32
    %c0_i32_0 = arith.constant 0 : i32
    return %arg1, %c0_i32 : i32, i32
  }
  func.func @transform_2(%arg0: i32, %arg1: i32) -> (i32, i32) {
    %c0_i32 = arith.constant 0 : i32
    %c0_i32_0 = arith.constant 0 : i32
    %c0_i32_1 = arith.constant 0 : i32
    return %c0_i32, %c0_i32_0 : i32, i32
  }
  func.func @transform_3(%arg0: i32, %arg1: i32) -> (i32, i32) {
    %c0_i32 = arith.constant 0 : i32
    %c0_i32_0 = arith.constant 0 : i32
    return %arg0, %c0_i32 : i32, i32
  }
}

</mosaic_0001>

<llo_original>
// kernel: cached_mnr_loss.1
$region0: #{cached_mnr_loss.1}
  #allocation0 [shape = 'u32[]', space=smem, size = 0x4, offset = 0x4, fixed_abs, tag = 'smem constant byte address 0x4 - core index']
  #allocation1 [shape = 'u32[144,128]{1,0:T(1,128)}', space=vmem, size = 0x12000, scoped, tag = 'internal scratch']
  #allocation2 [shape = 'f32[8,1]{1,0:T(8,128)}', space=vmem, size = 0x1000, scoped, tag = 'scratch operand']
  #allocation3 [shape = 'f32[8,1]{1,0:T(8,128)}', space=vmem, size = 0x1000, scoped, tag = 'scratch operand']
  %s0 = inlined_call_operand.vmem [shape: f32[16,64], index: 0, kind: input, shape index: {}]
  %s1 = inlined_call_operand.vmem [shape: f32[256,64], index: 1, kind: input, shape index: {}]
  %s2 = inlined_call_operand.vmem [shape: f32[1,256], index: 2, kind: input, shape index: {}]
  %s3 = inlined_call_operand.vmem [shape: f32[16,1], index: 3, kind: output, shape index: {}]
  %s4 = sld [smem:[#allocation0]]
  $region57: #{cached_mnr_loss.1} parent=0
    _
  %s6 = ssub.s32 1, %s4
  %s7 = scalar_select 0, %s6, %s4
  loop: start=0, step=1, limit=6
  $region2: #{cached_mnr_loss.1} parent=0 // loop_pre_header
    _
  $region3: #{cached_mnr_loss.1} parent=0 // loop_header
    %s9 = sphi 0, %s13
    %p10 = scmp.ge.s32.totalorder %s9, 6
    %s16 = sphi 0, %s28
    %s17 = sphi 0, %s24
    %s18 = sphi 0, %s16
    %s19 = sphi 0, %s17
    %s20 = sphi 0, %s18
    %s21 = sphi 0, %s19
    %s31 = sphi 0, %s33
    %s34 = sphi 0, %s31
    %s35 = sphi 0, %s34
    %s51 = sphi 0, %s35
    %s57 = sphi 0, %s59
    %s60 = sphi 0, %s57
    %s61 = sphi 0, %s60
    %s77 = sphi 0, %s61
    %s81 = sphi 0, %s81
    %s83 = sphi 0, %s81
    %s84 = sphi 0, %s83
    %s98 = sphi 0, %s84
    %s104 = sphi 0, %s106
    %s107 = sphi 0, %s104
    %s108 = sphi 0, %s107
    %s124 = sphi 0, %s108
  $region4: #{cached_mnr_loss.1} parent=0 // loop_header_branch
    %12 = sbr.rel (%p10) target = $region8
  $region5: #{cached_mnr_loss.1} parent=0 // loop_body
    %s14 = ssub.s32 %s9, 1
    %s15 = ssub.s32 %s9, 2
    %s22 = sadd.s32 1, %s17
    %p23 = scmp.ge.s32.totalorder %s22, 2
    %s24 = scalar_select %p23, 0, %s22
    %s25 = sadd.s32 1, %s16
    %s26 = scalar_select %p23, %s25, %s16
    %p27 = scmp.ge.s32.totalorder %s26, 2
    %s28 = scalar_select %p27, 0, %s26
    %s29 = ssub.s32 %s16, %s28
    %p30 = scmp.eq.s32.totalorder %s29, 0
    %s32 = sadd.s32 %s31, 1
    %s33 = scalar_select %p30, %s31, %s32
    %p36 = pneg %p30
    %p37 = scmp.eq.s32.totalorder %s9, 3
    %p38 = por %p36, %p37
    %p39 = scmp.ne.s32.totalorder %s31, %s34
    %p40 = scmp.eq.s32.totalorder %s9, 0
    %p41 = por %p39, %p40
    %p42 = scmp.ne.s32.totalorder %s31, %s34
    %p43 = scmp.eq.s32.totalorder %s14, 3
    %p44 = por %p42, %p43
    %p45 = scmp.ne.s32.totalorder %s34, %s35
    %p46 = scmp.eq.s32.totalorder %s14, 0
    %p47 = por %p45, %p46
    %p48 = scmp.ne.s32.totalorder %s34, %s35
    %p49 = scmp.eq.s32.totalorder %s15, 3
    %p50 = por %p48, %p49
    %p52 = scmp.ne.s32.totalorder %s35, %s51
    %p53 = scmp.eq.s32.totalorder %s15, 0
    %p54 = por %p52, %p53
    %s55 = ssub.s32 %s17, %s24
    %p56 = scmp.eq.s32.totalorder %s55, 0
    %s58 = sadd.s32 %s57, 1
    %s59 = scalar_select %p56, %s57, %s58
    %p62 = pneg %p56
    %p63 = scmp.eq.s32.totalorder %s9, 3
    %p64 = por %p62, %p63
    %p65 = scmp.ne.s32.totalorder %s57, %s60
    %p66 = scmp.eq.s32.totalorder %s9, 0
    %p67 = por %p65, %p66
    %p68 = scmp.ne.s32.totalorder %s57, %s60
    %p69 = scmp.eq.s32.totalorder %s14, 3
    %p70 = por %p68, %p69
    %p71 = scmp.ne.s32.totalorder %s60, %s61
    %p72 = scmp.eq.s32.totalorder %s14, 0
    %p73 = por %p71, %p72
    %p74 = scmp.ne.s32.totalorder %s60, %s61
    %p75 = scmp.eq.s32.totalorder %s15, 3
    %p76 = por %p74, %p75
    %p78 = scmp.ne.s32.totalorder %s61, %s77
    %p79 = scmp.eq.s32.totalorder %s15, 0
    %p80 = por %p78, %p79
    %s82 = sadd.s32 %s81, 1
    %p85 = scmp.eq.s32.totalorder %s9, 3
    %p86 = scmp.ne.s32.totalorder %s81, %s83
    %p87 = scmp.eq.s32.totalorder %s9, 0
    %p88 = por %p86, %p87
    %p89 = scmp.ne.s32.totalorder %s81, %s83
    %p90 = scmp.eq.s32.totalorder %s14, 3
    %p91 = por %p89, %p90
    %p92 = scmp.ne.s32.totalorder %s83, %s84
    %p93 = scmp.eq.s32.totalorder %s14, 0
    %p94 = por %p92, %p93
    %p95 = scmp.ne.s32.totalorder %s83, %s84
    %p96 = scmp.eq.s32.totalorder %s15, 3
    %p97 = por %p95, %p96
    %p99 = scmp.ne.s32.totalorder %s84, %s98
    %p100 = scmp.eq.s32.totalorder %s15, 0
    %p101 = por %p99, %p100
    %s102 = ssub.s32 %s16, %s28
    %p103 = scmp.eq.s32.totalorder %s102, 0
    %s105 = sadd.s32 %s104, 1
    %s106 = scalar_select %p103, %s104, %s105
    %p109 = pneg %p103
    %p110 = scmp.eq.s32.totalorder %s9, 3
    %p111 = por %p109, %p110
    %p112 = scmp.ne.s32.totalorder %s104, %s107
    %p113 = scmp.eq.s32.totalorder %s9, 0
    %p114 = por %p112, %p113
    %p115 = scmp.ne.s32.totalorder %s104, %s107
    %p116 = scmp.eq.s32.totalorder %s14, 3
    %p117 = por %p115, %p116
    %p118 = scmp.ne.s32.totalorder %s107, %s108
    %p119 = scmp.eq.s32.totalorder %s14, 0
    %p120 = por %p118, %p119
    %p121 = scmp.ne.s32.totalorder %s107, %s108
    %p122 = scmp.eq.s32.totalorder %s15, 3
    %p123 = por %p121, %p122
    %p125 = scmp.ne.s32.totalorder %s108, %s124
    %p126 = scmp.eq.s32.totalorder %s15, 0
    %p127 = por %p125, %p126
    %p128 = scmp.le.s32.totalorder 1, %s9
    %p129 = scmp.lt.s32.totalorder %s9, 5
    %p130 = pnand %p128, %p129
    %p131 = pneg %p130
    // Predicated region
    $region9: #{cached_mnr_loss.1} parent=5 // pred_check
      _
    $region10: #{cached_mnr_loss.1} parent=5 // pred_check_branch
      %133 = sbr.rel (%p130) target = $region12
    $region11: #{cached_mnr_loss.1} parent=5 // pred_region
      %s134 = ssub.s32 %s9, 1
      // Predicated region
      $region13: #{cached_mnr_loss.1} parent=11 // pred_check
        %p135 = pneg %p94
      $region14: #{cached_mnr_loss.1} parent=11 // pred_check_branch
        %137 = sbr.rel (%p135) target = $region16
      $region15: #{cached_mnr_loss.1} parent=11 // pred_region
        _
      $region16: #{cached_mnr_loss.1} parent=11 // pred_fallthru
        _
    $region12: #{cached_mnr_loss.1} parent=5 // pred_fallthru
      _
    %p138 = scmp.lt.s32.totalorder %s9, 4
    // Predicated region
    $region17: #{cached_mnr_loss.1} parent=5 // pred_check
      %p139 = pneg %p138
    $region18: #{cached_mnr_loss.1} parent=5 // pred_check_branch
      %141 = sbr.rel (%p139) target = $region20
    $region19: #{cached_mnr_loss.1} parent=5 // pred_region
      // Predicated region
      $region21: #{cached_mnr_loss.1} parent=19 // pred_check
        %p142 = pneg %p41
      $region22: #{cached_mnr_loss.1} parent=19 // pred_check_branch
        %144 = sbr.rel (%p142) target = $region24
      $region23: #{cached_mnr_loss.1} parent=19 // pred_region
        %p145 = scmp.lt.s32.totalorder %s16, 1
        %s146 = scalar_select %p145, %s16, 1
        %s147 = smul.addr %s146, 8
        %s148 = scalar_lea.vmem %s0, %s147
      $region24: #{cached_mnr_loss.1} parent=19 // pred_fallthru
        _
      // Predicated region
      $region25: #{cached_mnr_loss.1} parent=19 // pred_check
        %p149 = pneg %p67
      $region26: #{cached_mnr_loss.1} parent=19 // pred_check_branch
        %151 = sbr.rel (%p149) target = $region28
      $region27: #{cached_mnr_loss.1} parent=19 // pred_region
        %s152 = smul.u32 16, %s17
        %p153 = scmp.lt.s32.totalorder %s152, 31
        %s154 = scalar_select %p153, %s152, 31
        %s155 = smul.addr %s154, 8
        %s156 = scalar_lea.vmem %s1, %s155
        %s157 = smul.u32 16, %s17
      $region28: #{cached_mnr_loss.1} parent=19 // pred_fallthru
        _
    $region20: #{cached_mnr_loss.1} parent=5 // pred_fallthru
      _
    %p158 = scmp.le.s32.totalorder 1, %s9
    %p159 = scmp.lt.s32.totalorder %s9, 5
    %p160 = pnand %p158, %p159
    %p161 = pneg %p160
    // Predicated region
    $region29: #{cached_mnr_loss.1} parent=5 // pred_check
      _
    $region30: #{cached_mnr_loss.1} parent=5 // pred_check_branch
      %163 = sbr.rel (%p160) target = $region32
    $region31: #{cached_mnr_loss.1} parent=5 // pred_region
      %s164 = ssub.s32 %s9, 1
      %p165 = scmp.lt.s32.totalorder %s18, 1
      %s166 = scalar_select %p165, %s18, 1
      %s167 = smul.addr %s166, 8
      %s168 = scalar_lea.vmem %s0, %s167
      %p169 = pneg %p47
      %p170 = pneg %p44
      %s171 = smul.u32 16, %s19
      %p172 = scmp.lt.s32.totalorder %s171, 31
      %s173 = scalar_select %p172, %s171, 31
      %s174 = smul.addr %s173, 8
      %s175 = scalar_lea.vmem %s1, %s174
      %p176 = pneg %p73
      %p177 = pneg %p70
      %p178 = pneg %p94
      %p179 = pneg %p91
      %p180 = pneg %p120
      %p181 = pneg %p117
      %p182 = scmp.lt.s32.totalorder %s18, 1
      %s183 = scalar_select %p182, %s18, 1
      %s184 = smul.addr %s183, 8
      %s185 = scalar_lea.vmem %s3, %s184
      %p186 = scmp.lt.s32.totalorder %s18, 1
      %s187 = scalar_select %p186, %s18, 1
      %s188 = smul.addr %s187, 8
      %s189 = scalar_lea.vmem %s0, %s188
      %s190 = smul.u32 16, %s19
      %p191 = scmp.lt.s32.totalorder %s190, 31
      %s192 = scalar_select %p191, %s190, 31
      %s193 = smul.addr %s192, 8
      %s194 = scalar_lea.vmem %s1, %s193
      %s195 = smul.u32 16, %s19
      %p196 = scmp.lt.s32.totalorder %s18, 1
      %s197 = scalar_select %p196, %s18, 1
      %s198 = smul.addr %s197, 8
      %s199 = scalar_lea.vmem %s3, %s198
      %p200 = scmp.eq.s32.totalorder %s19, 0
      // Predicated region
      $region33: #{cached_mnr_loss.1} parent=31 // pred_check
        %p201 = pneg %p200
      $region34: #{cached_mnr_loss.1} parent=31 // pred_check_branch
        %203 = sbr.rel (%p201) target = $region36
      $region35: #{cached_mnr_loss.1} parent=31 // pred_region
        %vm204 = vcmask 7168
        %205 = vst.msk [vmem:[#allocation2] sm:$0xff] %vm204, 0.0
        %206 = vst.msk [vmem:[#allocation3] sm:$0xff] %vm204, 0.0
      $region36: #{cached_mnr_loss.1} parent=31 // pred_fallthru
        _
      %v207 = vld [vmem:[%s189] sm:$0xff]
      %v208 = vld [vmem:[%s194] sm:$0xff]
      %v209 = vld [vmem:[%s194 + $0x8] sm:$0xff]
      %v210 = vld [vmem:[%s194 + $0x10] sm:$0xff]
      %v211 = vld [vmem:[%s194 + $0x18] sm:$0xff]
      %v212 = vld [vmem:[%s194 + $0x20] sm:$0xff]
      %v213 = vld [vmem:[%s194 + $0x28] sm:$0xff]
      %v214 = vld [vmem:[%s194 + $0x30] sm:$0xff]
      %v215 = vld [vmem:[%s194 + $0x38] sm:$0xff]
      %v216 = vld [vmem:[%s194 + $0x40] sm:$0xff]
      %v217 = vld [vmem:[%s194 + $0x48] sm:$0xff]
      %v218 = vld [vmem:[%s194 + $0x50] sm:$0xff]
      %v219 = vld [vmem:[%s194 + $0x58] sm:$0xff]
      %v220 = vld [vmem:[%s194 + $0x60] sm:$0xff]
      %v221 = vld [vmem:[%s194 + $0x68] sm:$0xff]
      %v222 = vld [vmem:[%s194 + $0x70] sm:$0xff]
      %v223 = vld [vmem:[%s194 + $0x78] sm:$0xff]
      %vm224 = vcmask 523264
      %v226 = vsel %vm224, %v207, 0
      %v229 = vsel %vm224, %v208, 0
      %v232 = vsel %vm224, %v209, 0
      %v235 = vsel %vm224, %v210, 0
      %v238 = vsel %vm224, %v211, 0
      %v241 = vsel %vm224, %v212, 0
      %v244 = vsel %vm224, %v213, 0
      %v247 = vsel %vm224, %v214, 0
      %v250 = vsel %vm224, %v215, 0
      %v253 = vsel %vm224, %v216, 0
      %v256 = vsel %vm224, %v217, 0
      %v259 = vsel %vm224, %v218, 0
      %v262 = vsel %vm224, %v219, 0
      %v265 = vsel %vm224, %v220, 0
      %v268 = vsel %vm224, %v221, 0
      %v271 = vsel %vm224, %v222, 0
      %v274 = vsel %vm224, %v223, 0
      %276 = vmatprep.subr.mxu0 0.0
      %277 = vmatpush1.xpose.msra.mxu0 %v229
      %278 = vmatprep.subr.mxu0 0.0
      %279 = vmatpush1.xpose.msra.mxu0 %v232
      %280 = vmatprep.subr.mxu0 0.0
      %281 = vmatpush1.xpose.msra.mxu0 %v235
      %282 = vmatprep.subr.mxu0 0.0
      %283 = vmatpush1.xpose.msra.mxu0 %v238
      %284 = vmatprep.subr.mxu0 0.0
      %285 = vmatpush1.xpose.msra.mxu0 %v241
      %286 = vmatprep.subr.mxu0 0.0
      %287 = vmatpush1.xpose.msra.mxu0 %v244
      %288 = vmatprep.subr.mxu0 0.0
      %289 = vmatpush1.xpose.msra.mxu0 %v247
      %290 = vmatprep.subr.mxu0 0.0
      %291 = vmatpush1.xpose.msra.mxu0 %v250
      %292 = vmatprep.subr.mxu0 0.0
      %293 = vmatpush1.xpose.msra.mxu0 %v253
      %294 = vmatprep.subr.mxu0 0.0
      %295 = vmatpush1.xpose.msra.mxu0 %v256
      %296 = vmatprep.subr.mxu0 0.0
      %297 = vmatpush1.xpose.msra.mxu0 %v259
      %298 = vmatprep.subr.mxu0 0.0
      %299 = vmatpush1.xpose.msra.mxu0 %v262
      %300 = vmatprep.subr.mxu0 0.0
      %301 = vmatpush1.xpose.msra.mxu0 %v265
      %302 = vmatprep.subr.mxu0 0.0
      %303 = vmatpush1.xpose.msra.mxu0 %v268
      %304 = vmatprep.subr.mxu0 0.0
      %305 = vmatpush1.xpose.msra.mxu0 %v271
      %306 = vmatprep.subr.mxu0 0.0
      %307 = vmatpush1.xpose.msra.mxu0 %v274
      %308 = vmatprep.subr.mxu0 0.0
      %309 = vmatpush1.xpose.msra.mxu0 0.0
      %310 = vmatprep.subr.mxu0 0.0
      %311 = vmatpush1.xpose.msra.mxu0 0.0
      %312 = vmatprep.subr.mxu0 0.0
      %313 = vmatpush1.xpose.msra.mxu0 0.0
      %314 = vmatprep.subr.mxu0 0.0
      %315 = vmatpush1.xpose.msra.mxu0 0.0
      %316 = vmatprep.subr.mxu0 0.0
      %317 = vmatpush1.xpose.msra.mxu0 0.0
      %318 = vmatprep.subr.mxu0 0.0
      %319 = vmatpush1.xpose.msra.mxu0 0.0
      %320 = vmatprep.subr.mxu0 0.0
      %321 = vmatpush1.xpose.msra.mxu0 0.0
      %322 = vmatprep.subr.mxu0 0.0
      %323 = vmatpush1.xpose.msra.mxu0 0.0
      %324 = vmatprep.subr.mxu0 0.0
      %325 = vmatpush1.xpose.msra.mxu0 0.0
      %326 = vmatprep.subr.mxu0 0.0
      %327 = vmatpush1.xpose.msra.mxu0 0.0
      %328 = vmatprep.subr.mxu0 0.0
      %329 = vmatpush1.xpose.msra.mxu0 0.0
      %330 = vmatprep.subr.mxu0 0.0
      %331 = vmatpush1.xpose.msra.mxu0 0.0
      %332 = vmatprep.subr.mxu0 0.0
      %333 = vmatpush1.xpose.msra.mxu0 0.0
      %334 = vmatprep.subr.mxu0 0.0
      %335 = vmatpush1.xpose.msra.mxu0 0.0
      %336 = vmatprep.subr.mxu0 0.0
      %337 = vmatpush1.xpose.msra.mxu0 0.0
      %338 = vmatprep.subr.mxu0 0.0
      %339 = vmatpush1.xpose.msra.mxu0 0.0
      %340 = vmatprep.mubr.f32.mxu0 0.0
      %341 = vmatmul.mubr.f32.gmra.mrb[0].mxu0 %v226
      %v342 = vpop.f32.mrb[0].mxu0
      %v343 = vadd.f32 0.0, %v342
      %v344 = vpop.f32.mrb[0].mxu0
      %345 = vdwg.mxu0
      %s346 = smul.u32 %s19, 128
      %s347 = sshra.s32 %s346, 7
      %s348 = sand.u32 %s346, 127
      %s349 = scalar_lea.vmem %s2, %s347
      %v350 = vld [vmem:[%s349] sm:$0x1]
      %v352 = vlaneseq
      %v353 = vshrl.u32 %v352, 7
      %v354 = vsub.s32 0, %v353
      %v355 = vrot.slane %v350, %v354
      %v357 = vmul.f32 %v343, %v355
      %v358 = vld [vmem:[#allocation2] sm:$0xff]
      %v359 = vsub.f32 %v357, 20.0
      %v360 = vmul.f32 %v359, 1.442695
      %v361 = vpow.pop %v360
      %362 = vadd.xlane.f32.xlu0 %v361
      %v363 = vpop.xlane.xlu0 %362
      %v364 = vadd.f32 %v358, %v363
      %vm365 = vcmask 7168
      %366 = vst.msk [vmem:[#allocation2] sm:$0xff] %vm365, %v364
      %s367 = smul.u32 %s18, 8
      %s368 = sadd.s32 %s367, 8
      %p369 = scmp.lt.s32.totalorder %s346, %s368
      %s370 = sadd.s32 %s346, 128
      %p371 = scmp.lt.s32.totalorder %s367, %s370
      %p372 = pnand %p369, %p371
      %p373 = pneg %p372
      // Predicated region
      $region37: #{cached_mnr_loss.1} parent=31 // pred_check
        _
      $region38: #{cached_mnr_loss.1} parent=31 // pred_check_branch
        %375 = sbr.rel (%p372) target = $region40
      $region39: #{cached_mnr_loss.1} parent=31 // pred_region
        %v376 = vlaneseq
        %v377 = vshrl.u32 %v376, 7
        %v378 = vstv %s367
        %v379 = vadd.s32 %v378, %v377
        %v380 = vlaneseq
        %v381 = vand.u32 %v380, 127
        %v382 = vstv %s346
        %v383 = vadd.s32 %v382, %v381
        %v384 = vld [vmem:[#allocation3] sm:$0xff]
        %vm385 = vcmp.eq.s32.totalorder %v379, %v383
        %v386 = vsel %vm385, %v357, 0.0
        %387 = vadd.xlane.f32.xlu0 %v386
        %v388 = vpop.xlane.xlu0 %387
        %v389 = vadd.f32 %v384, %v388
        %390 = vst.msk [vmem:[#allocation3] sm:$0xff] %vm365, %v389
      $region40: #{cached_mnr_loss.1} parent=31 // pred_fallthru
        _
      %p391 = scmp.eq.s32.totalorder %s19, 1
      // Predicated region
      $region41: #{cached_mnr_loss.1} parent=31 // pred_check
        %p392 = pneg %p391
      $region42: #{cached_mnr_loss.1} parent=31 // pred_check_branch
        %394 = sbr.rel (%p392) target = $region44
      $region43: #{cached_mnr_loss.1} parent=31 // pred_region
        %v395 = vld [vmem:[#allocation2] sm:$0xff]
        %v396 = vlog2.pop %v395
        %v397 = vmul.f32 %v396, 0.6931472
        %v398 = vadd.f32 %v397, 20.0
        %v399 = vld [vmem:[#allocation3] sm:$0xff]
        %v400 = vsub.f32 %v398, %v399
        %401 = vst.msk [vmem:[%s199] sm:$0xff] %vm365, %v400
      $region44: #{cached_mnr_loss.1} parent=31 // pred_fallthru
        _
      %p402 = scmp.lt.s32.totalorder %s18, 1
      %s403 = scalar_select %p402, %s18, 1
      %s404 = smul.addr %s403, 8
      %s405 = scalar_lea.vmem %s3, %s404
      // Predicated region
      $region45: #{cached_mnr_loss.1} parent=31 // pred_check
        %p406 = pneg %p117
      $region46: #{cached_mnr_loss.1} parent=31 // pred_check_branch
        %408 = sbr.rel (%p406) target = $region48
      $region47: #{cached_mnr_loss.1} parent=31 // pred_region
        _
      $region48: #{cached_mnr_loss.1} parent=31 // pred_fallthru
        _
    $region32: #{cached_mnr_loss.1} parent=5 // pred_fallthru
      _
    %p409 = scmp.le.s32.totalorder 2, %s9
    // Predicated region
    $region49: #{cached_mnr_loss.1} parent=5 // pred_check
      %p410 = pneg %p409
    $region50: #{cached_mnr_loss.1} parent=5 // pred_check_branch
      %412 = sbr.rel (%p410) target = $region52
    $region51: #{cached_mnr_loss.1} parent=5 // pred_region
      %s413 = ssub.s32 %s9, 2
      // Predicated region
      $region53: #{cached_mnr_loss.1} parent=51 // pred_check
        %p414 = pneg %p123
      $region54: #{cached_mnr_loss.1} parent=51 // pred_check_branch
        %416 = sbr.rel (%p414) target = $region56
      $region55: #{cached_mnr_loss.1} parent=51 // pred_region
        %p417 = scmp.lt.s32.totalorder %s20, 1
        %s418 = scalar_select %p417, %s20, 1
        %s419 = smul.addr %s418, 8
        %s420 = scalar_lea.vmem %s3, %s419
      $region56: #{cached_mnr_loss.1} parent=51 // pred_fallthru
        _
    $region52: #{cached_mnr_loss.1} parent=5 // pred_fallthru
      _
  $region6: #{cached_mnr_loss.1} parent=0 // loop_footer
    %s13 = sadd.s32 1, %s9
  $region7: #{cached_mnr_loss.1} parent=0 // loop_footer_branch
    %8 = sbr.rel target = $region3
  $region8: #{cached_mnr_loss.1} parent=0 // loop_exit
    _

</llo_original>
